<compile_context>
chip_gen: v7x
topology: tpu7x:2x2x1
jax: 0.10.0
libtpu: 0.0.40
codegen_flags: <defaults>
</compile_context>

<pallas_src>
import functools

import jax
import jax.numpy as jnp
from jax.experimental import pallas as pl
from jax.experimental.pallas import tpu as pltpu


_N_PAD = 128                        # lane-dense output width (real logits in lanes [0, 2))
_W_RESIDENT_CAP = 8 * 1024 * 1024   # keep weight VMEM-resident when one copy fits here


def _cdiv(a, b):
    return -(-a // b)


def _round_up(n, m):
    return _cdiv(n, m) * m


def _cls_head_kernel(x_ref, w_ref, b_ref, o_ref, acc_ref, *, tk, nk, resident):
    # x_ref:   (TB, TK)      flattened-feature tile (native dtype)
    # w_ref:   (Kp, 128) if resident else (TK, 128); pre-transposed, zero-padded
    # b_ref:   (1, 128)      bias, zero-padded, f32
    # o_ref:   (TB, 128)     lane-dense logits tile
    # acc_ref: (TB, 128)     f32 accumulator (persists across the K axis)
    k = pl.program_id(1)

    @pl.when(k == 0)
    def _init():
        acc_ref[...] = jnp.zeros_like(acc_ref)

    if resident and nk > 1:
        k0 = pl.multiple_of(k * tk, 128)          # tk is a multiple of 128 here
        w = w_ref[pl.ds(k0, tk), :]
    else:
        w = w_ref[...]

    acc_ref[...] += jnp.dot(x_ref[...], w, preferred_element_type=jnp.float32)  # MXU, f32 acc

    @pl.when(k == nk - 1)
    def _finalize():
        # f32 epilogue; single unmasked lane-dense store per batch tile.
        o_ref[...] = (acc_ref[...] + b_ref[...]).astype(o_ref.dtype)


def cls_head_forward(x, weight, bias, *, tb_cap=512, tk_cap=None):
    """Cls_head.forward: Flatten + Linear(proj_dim, 2) as a tiled Pallas kernel.

    x:      (B, ...) encoder output, trailing feature dims flattened here.
    weight: (2, proj_dim)  -- PyTorch nn.Linear layout.
    bias:   (2,)
    returns (B, 2) logits in x's dtype.
    """
    B = x.shape[0]
    x2d = x.reshape(B, -1)                     # nn.Flatten (wrapper glue)
    proj_dim = x2d.shape[1]
    assert weight.shape == (2, proj_dim)
    dtype = x2d.dtype
    itemsize = jnp.dtype(dtype).itemsize
    sub = {4: 8, 2: 16, 1: 32}.get(itemsize, 8)          # sublane packing multiple
    if tk_cap is None:
        tk_cap = 8192 // itemsize                        # ~4 MiB x block at TB=512

    # ---- batch tiling: never round B up past the tile boundary ------------------
    nb = max(_cdiv(B, tb_cap), 2 if B >= 2 * sub else 1)  # nb>=2 feeds both v7x TCs
    TB = _round_up(_cdiv(B, nb), sub)
    if TB >= B:
        TB = B                                  # single full-dim block (always legal)
    nb = _cdiv(B, TB)                           # last block may be partial: Pallas masks it

    # ---- K tiling: TK divides Kp so x (almost) never needs K padding ------------
    if proj_dim <= tk_cap:
        TK = Kp = proj_dim                      # single full-dim K block
    else:
        if proj_dim % 128 == 0:
            Kp = proj_dim
        else:
            # TODO(synk): rare unaligned proj_dim > tk_cap path; zero-pads x once in K.
            Kp = _round_up(proj_dim, 128)
        TK = 128
        for t in range(tk_cap // 128, 0, -1):   # largest 128-multiple divisor of Kp
            if Kp % (t * 128) == 0:
                TK = t * 128
                break
        if Kp != proj_dim:
            x2d = jnp.pad(x2d, ((0, 0), (0, Kp - proj_dim)))
    nk = Kp // TK

    # weight: transpose + zero-pad to (Kp, 128); bias: zero-pad to (1, 128) f32.
    w_t = jnp.zeros((Kp, _N_PAD), dtype=dtype).at[:proj_dim, :2].set(
        jnp.asarray(weight, dtype).T)
    b_pad = jnp.zeros((1, _N_PAD), jnp.float32).at[0, :2].set(
        jnp.asarray(bias, jnp.float32))

    # keep the whole weight in VMEM (DMA'd exactly once) unless it is unusually big
    resident = (Kp * _N_PAD * itemsize) <= _W_RESIDENT_CAP
    if resident:
        w_spec = pl.BlockSpec((Kp, _N_PAD), lambda i, k: (0, 0))
    else:
        w_spec = pl.BlockSpec((TK, _N_PAD), lambda i, k: (k, 0))

    out_itemsize = itemsize
    vmem_need = (2 * TB * TK * itemsize                              # x (double-buffered)
                 + 2 * (Kp if resident else TK) * _N_PAD * itemsize  # weight
                 + 2 * _N_PAD * 4                                    # bias
                 + 2 * TB * _N_PAD * out_itemsize                    # out
                 + TB * _N_PAD * 4)                                  # f32 accumulator
    vmem_limit = int(min(48 << 20, max(32 << 20, vmem_need + (4 << 20))))

    cost = pl.CostEstimate(
        flops=2 * B * Kp * _N_PAD,
        transcendentals=0,
        bytes_accessed=(B * Kp * itemsize               # x, read once
                        + Kp * _N_PAD * itemsize        # weight, read once
                        + _N_PAD * 4                    # bias
                        + B * _N_PAD * out_itemsize),   # lane-dense output
    )

    kernel = functools.partial(_cls_head_kernel, tk=TK, nk=nk, resident=resident)

    out = pl.pallas_call(
        kernel,
        out_shape=jax.ShapeDtypeStruct((B, _N_PAD), dtype),
        grid_spec=pltpu.PrefetchScalarGridSpec(
            num_scalar_prefetch=0,
            grid=(nb, nk),                                        # reduction axis last
            in_specs=[
                pl.BlockSpec((TB, TK), lambda i, k: (i, k)),      # x tile
                w_spec,                                           # weight (VMEM-resident)
                pl.BlockSpec((1, _N_PAD), lambda i, k: (0, 0)),   # bias (constant block)
            ],
            out_specs=pl.BlockSpec((TB, _N_PAD), lambda i, k: (i, 0)),
            scratch_shapes=[pltpu.VMEM((TB, _N_PAD), jnp.float32)],
        ),
        compiler_params=pltpu.CompilerParams(
            dimension_semantics=("parallel", "arbitrary"),
            vmem_limit_bytes=vmem_limit,
        ),
        cost_estimate=cost,
    )(x2d, w_t, b_pad)

    return out[:, :2]                          # slice the 2 real logits (wrapper glue)


def lincls_forward(x, weight, bias):
    """Lincls.forward (frozen multi_scale + encoder are checkpoint-defined; see TODO)."""
    return cls_head_forward(x, weight, bias)


if __name__ == "__main__":
    key = jax.random.PRNGKey(0)
    k_x, k_w, k_b, k_x2, k_w2, k_b2 = jax.random.split(key, 6)

    # --- test 1: small aligned shapes (single batch / single K block) ------------
    B, F1, F2 = 8, 4, 8                 # encoder output tokens x dim -> proj_dim = 32
    proj_dim = F1 * F2
    x = jax.random.normal(k_x, (B, F1, F2), dtype=jnp.float32)
    weight = jax.random.normal(k_w, (2, proj_dim), dtype=jnp.float32) * (1.0 / proj_dim ** 0.5)
    bias = jax.random.normal(k_b, (2,), dtype=jnp.float32) * 0.01

    logits = lincls_forward(x, weight, bias)
    jax.block_until_ready(logits)
    ref = jnp.dot(x.reshape(B, -1), weight.T,
                  precision=jax.lax.Precision.HIGHEST) + bias
    assert logits.shape == (B, 2)
    assert jnp.allclose(logits, ref, atol=1e-3, rtol=1e-3)

    # --- test 2: partial batch block + multi-K resident-weight slicing -----------
    B2, proj_dim2 = 20, 256
    x2 = jax.random.normal(k_x2, (B2, proj_dim2), dtype=jnp.float32)
    weight2 = jax.random.normal(k_w2, (2, proj_dim2), dtype=jnp.float32) * (1.0 / proj_dim2 ** 0.5)
    bias2 = jax.random.normal(k_b2, (2,), dtype=jnp.float32) * 0.01

    logits2 = cls_head_forward(x2, weight2, bias2, tk_cap=128)   # forces nk=2
    jax.block_until_ready(logits2)
    ref2 = jnp.dot(x2, weight2.T, precision=jax.lax.Precision.HIGHEST) + bias2
    assert logits2.shape == (B2, 2)
    assert jnp.allclose(logits2, ref2, atol=1e-3, rtol=1e-3)

    print("KERNEL_OK")
</pallas_src>

<mosaic_0001>
module attributes {stable_mosaic.version = 11 : i64} {
  func.func @_cls_head_kernel(%arg0: i32, %arg1: i32, %arg2: memref<8x32xf32, #tpu.memory_space<vmem>>, %arg3: memref<32x128xf32, #tpu.memory_space<vmem>>, %arg4: memref<1x128xf32, #tpu.memory_space<vmem>>, %arg5: memref<8x128xf32, #tpu.memory_space<vmem>>, %arg6: memref<8x128xf32, #tpu.memory_space<vmem>>) attributes {dimension_semantics = [#tpu.dimension_semantics<parallel>, #tpu.dimension_semantics<arbitrary>], iteration_bounds = array<i64: 1, 1>, scalar_prefetch = 0 : i64, scratch_operands = 1 : i64, tpu.core_type = #tpu.core_type<tc>, window_params = [{transform_indices = @transform_0, window_bounds = array<i64: 8, 32>}, {pipeline_mode = #tpu.pipeline_mode<synchronous>, transform_indices = @transform_1, window_bounds = array<i64: 32, 128>}, {pipeline_mode = #tpu.pipeline_mode<synchronous>, transform_indices = @transform_2, window_bounds = array<i64: 1, 128>}, {transform_indices = @transform_3, window_bounds = array<i64: 8, 128>}]} {
    %c0_i32 = arith.constant 0 : i32
    %0 = arith.cmpi eq, %arg1, %c0_i32 : i32
    %1 = arith.extui %0 : i1 to i32
    %c0_i32_0 = arith.constant 0 : i32
    %2 = arith.cmpi ne, %1, %c0_i32_0 : i32
    scf.if %2 {
      %cst_10 = arith.constant 0.000000e+00 : f32
      %12 = vector.broadcast %cst_10 : f32 to vector<8x128xf32>
      %c0_11 = arith.constant 0 : index
      %c0_12 = arith.constant 0 : index
      %13 = vector.load %arg6[%c0_11, %c0_12] : memref<8x128xf32, #tpu.memory_space<vmem>>, vector<8x128xf32>
      tpu.vector_store %arg6[%c0_11, %c0_12], %12 {strides = array<i32>} : memref<8x128xf32, #tpu.memory_space<vmem>>, vector<8x128xf32>,
    } else {
    }
    %c0 = arith.constant 0 : index
    %c0_1 = arith.constant 0 : index
    %3 = vector.load %arg3[%c0, %c0_1] : memref<32x128xf32, #tpu.memory_space<vmem>>, vector<32x128xf32>
    %c0_2 = arith.constant 0 : index
    %c0_3 = arith.constant 0 : index
    %4 = vector.load %arg6[%c0_2, %c0_3] : memref<8x128xf32, #tpu.memory_space<vmem>>, vector<8x128xf32>
    %c0_4 = arith.constant 0 : index
    %c0_5 = arith.constant 0 : index
    %5 = vector.load %arg2[%c0_4, %c0_5] : memref<8x32xf32, #tpu.memory_space<vmem>>, vector<8x32xf32>
    %cst = arith.constant dense<0.000000e+00> : vector<8x128xf32>
    %6 = tpu.matmul %5, %3, %cst {dimension_numbers = #tpu.dot_dimension_numbers<[1], [0], [0], [1], [0, 0, 1, 1], [], []>} : vector<8x32xf32>, vector<32x128xf32>, vector<8x128xf32> -> vector<8x128xf32>
    %7 = arith.addf %4, %6 : vector<8x128xf32>
    %c0_6 = arith.constant 0 : index
    %c0_7 = arith.constant 0 : index
    %8 = vector.load %arg6[%c0_6, %c0_7] : memref<8x128xf32, #tpu.memory_space<vmem>>, vector<8x128xf32>
    tpu.vector_store %arg6[%c0_6, %c0_7], %7 {strides = array<i32>} : memref<8x128xf32, #tpu.memory_space<vmem>>, vector<8x128xf32>,
    %c0_i32_8 = arith.constant 0 : i32
    %9 = arith.cmpi eq, %arg1, %c0_i32_8 : i32
    %10 = arith.extui %9 : i1 to i32
    %c0_i32_9 = arith.constant 0 : i32
    %11 = arith.cmpi ne, %10, %c0_i32_9 : i32
    scf.if %11 {
      %c0_10 = arith.constant 0 : index
      %c0_11 = arith.constant 0 : index
      %12 = vector.load %arg6[%c0_10, %c0_11] : memref<8x128xf32, #tpu.memory_space<vmem>>, vector<8x128xf32>
      %c0_12 = arith.constant 0 : index
      %c0_13 = arith.constant 0 : index
      %13 = vector.load %arg4[%c0_12, %c0_13] : memref<1x128xf32, #tpu.memory_space<vmem>>, vector<1x128xf32>
      %14 = vector.broadcast %13 : vector<1x128xf32> to vector<8x128xf32>
      %15 = arith.addf %12, %14 : vector<8x128xf32>
      %c0_14 = arith.constant 0 : index
      %c0_15 = arith.constant 0 : index
      %16 = vector.load %arg5[%c0_14, %c0_15] : memref<8x128xf32, #tpu.memory_space<vmem>>, vector<8x128xf32>
      tpu.vector_store %arg5[%c0_14, %c0_15], %15 {strides = array<i32>} : memref<8x128xf32, #tpu.memory_space<vmem>>, vector<8x128xf32>,
    } else {
    }
    return
  }
  func.func @transform_0(%arg0: i32, %arg1: i32) -> (i32, i32) {
    %c0_i32 = arith.constant 0 : i32
    return %arg0, %arg1 : i32, i32
  }
  func.func @transform_1(%arg0: i32, %arg1: i32) -> (i32, i32) {
    %c0_i32 = arith.constant 0 : i32
    %c0_i32_0 = arith.constant 0 : i32
    %c0_i32_1 = arith.constant 0 : i32
    return %c0_i32, %c0_i32_0 : i32, i32
  }
  func.func @transform_2(%arg0: i32, %arg1: i32) -> (i32, i32) {
    %c0_i32 = arith.constant 0 : i32
    %c0_i32_0 = arith.constant 0 : i32
    %c0_i32_1 = arith.constant 0 : i32
    return %c0_i32, %c0_i32_0 : i32, i32
  }
  func.func @transform_3(%arg0: i32, %arg1: i32) -> (i32, i32) {
    %c0_i32 = arith.constant 0 : i32
    %c0_i32_0 = arith.constant 0 : i32
    return %arg0, %c0_i32 : i32, i32
  }
}

</mosaic_0001>

<llo_original>
// kernel: tpu_custom_call.1
$region0: #{tpu_custom_call.1}
  #allocation0 [shape = 'u32[]', space=smem, size = 0x4, offset = 0x4, fixed_abs, tag = 'smem constant byte address 0x4 - core index']
  #allocation1 [shape = 'u32[144,128]{1,0:T(1,128)}', space=vmem, size = 0x12000, scoped, tag = 'internal scratch']
  #allocation2 [shape = 'f32[8,128]{1,0:T(8,128)}', space=vmem, size = 0x1000, scoped, tag = 'scratch operand']
  %s0 = inlined_call_operand.hbm [shape: f32[8,32], index: 0, kind: input, shape index: {}]
  %s1 = inlined_call_operand.hbm [shape: f32[32,128], index: 1, kind: input, shape index: {}]
  %s2 = inlined_call_operand.vmem [shape: f32[1,128], index: 2, kind: input, shape index: {}]
  %s3 = inlined_call_operand.hbm [shape: f32[8,128], index: 3, kind: output, shape index: {}]
  %s4 = sld [smem:[#allocation0]]
  $region38: #{tpu_custom_call.1} parent=0
    _
  %s6 = ssub.s32 1, %s4
  %s7 = scalar_select 0, %s6, %s4
  $region1: #{tpu_custom_call.1} parent=0
    #allocation3 [shape = 'u8[4096]{0}', space=vmem, size = 0x1000, scoped, tag = 'input window, operand 0, single buffered']
    #allocation4 [shape = 's32[1]{0}', space=sflag, size = 0x4, scoped, tag = 'scoped memory for tpu_custom_call.1']
    #allocation5 [shape = 's32[1]{0}', space=sflag, size = 0x4, scoped, tag = 'scoped memory for tpu_custom_call.1']
    #allocation6 [shape = 'u8[16384]{0}', space=vmem, size = 0x4000, scoped, tag = 'input window, operand 1, single buffered']
    #allocation7 [shape = 's32[1]{0}', space=sflag, size = 0x4, scoped, tag = 'scoped memory for tpu_custom_call.1']
    #allocation8 [shape = 'u8[4096]{0}', space=vmem, size = 0x1000, scoped, tag = 'output window, operand 0, single buffered']
    %8 = vsyncpa [#allocation4], 0
    %9 = vsyncpa [#allocation7], 0
    %10 = vsyncpa [#allocation5], 0
    // Predicated region
    $region2: #{tpu_custom_call.1} parent=1 // pred_check
      _
    $region3: #{tpu_custom_call.1} parent=1 // pred_check_branch
      %12 = sbr.rel (0) target = $region5
    $region4: #{tpu_custom_call.1} parent=1 // pred_region
      %s14 = ssub.s32 128, 128
      %15 = vsyncadd [#allocation4], %s14
      %s17 = sshll.u32 [#allocation3], 4
      %s18 = int_to_ptr.vmem [resolvable:$true] %s17
      %20 = dma.hbm_to_vmem [thread:$0]  %s0, 128, %s18, [#allocation4]
    $region5: #{tpu_custom_call.1} parent=1 // pred_fallthru
      _
    // Predicated region
    $region6: #{tpu_custom_call.1} parent=1 // pred_check
      _
    $region7: #{tpu_custom_call.1} parent=1 // pred_check_branch
      %22 = sbr.rel (0) target = $region9
    $region8: #{tpu_custom_call.1} parent=1 // pred_region
      %s24 = ssub.s32 512, 512
      %25 = vsyncadd [#allocation7], %s24
      %s26 = sshll.u32 [#allocation6], 4
      %s27 = int_to_ptr.vmem [resolvable:$true] %s26
      %32 = dma.hbm_to_vmem [thread:$0]  %s1, 512, %s27, [#allocation7], 128, 128, 8
    $region9: #{tpu_custom_call.1} parent=1 // pred_fallthru
      _
    // Predicated region
    $region10: #{tpu_custom_call.1} parent=1 // pred_check
      _
    $region11: #{tpu_custom_call.1} parent=1 // pred_check_branch
      %34 = sbr.rel (0) target = $region13
    $region12: #{tpu_custom_call.1} parent=1 // pred_region
      _
    $region13: #{tpu_custom_call.1} parent=1 // pred_fallthru
      _
    // Predicated region
    $region14: #{tpu_custom_call.1} parent=1 // pred_check
      _
    $region15: #{tpu_custom_call.1} parent=1 // pred_check_branch
      %36 = sbr.rel (0) target = $region17
    $region16: #{tpu_custom_call.1} parent=1 // pred_region
      %37 = dma.done [#allocation4], 128
    $region17: #{tpu_custom_call.1} parent=1 // pred_fallthru
      _
    // Predicated region
    $region18: #{tpu_custom_call.1} parent=1 // pred_check
      _
    $region19: #{tpu_custom_call.1} parent=1 // pred_check_branch
      %39 = sbr.rel (0) target = $region21
    $region20: #{tpu_custom_call.1} parent=1 // pred_region
      %40 = dma.done [#allocation7], 512
    $region21: #{tpu_custom_call.1} parent=1 // pred_fallthru
      _
    %p41 = scmp.eq.s32.totalorder 0, 0
    // Predicated region
    $region22: #{tpu_custom_call.1} parent=1 // pred_check
      %p42 = pneg %p41
    $region23: #{tpu_custom_call.1} parent=1 // pred_check_branch
      %44 = sbr.rel (%p42) target = $region25
    $region24: #{tpu_custom_call.1} parent=1 // pred_region
      %45 = vst [vmem:[#allocation2] sm:$0xff] 0.0
    $region25: #{tpu_custom_call.1} parent=1 // pred_fallthru
      _
    %v46 = vld [vmem:[#allocation6] sm:$0xff]
    %v47 = vld [vmem:[#allocation6 + $0x8] sm:$0xff]
    %v48 = vld [vmem:[#allocation6 + $0x10] sm:$0xff]
    %v49 = vld [vmem:[#allocation6 + $0x18] sm:$0xff]
    %v50 = vld [vmem:[#allocation2] sm:$0xff]
    %v51 = vld [vmem:[#allocation3] sm:$0xff]
    %vm52 = vcmask 261120
    %v54 = vsel %vm52, %v51, 0
    %56 = vmatprep.subr.mxu0 0.0
    %57 = vmatpush1.msra.mxu0 %v46
    %58 = vmatprep.subr.mxu0 0.0
    %59 = vmatpush1.msra.mxu0 %v47
    %60 = vmatprep.subr.mxu0 0.0
    %61 = vmatpush1.msra.mxu0 %v48
    %62 = vmatprep.subr.mxu0 0.0
    %63 = vmatpush1.msra.mxu0 %v49
    %64 = vmatprep.subr.mxu0 0.0
    %65 = vmatpush1.msra.mxu0 0.0
    %66 = vmatprep.subr.mxu0 0.0
    %67 = vmatpush1.msra.mxu0 0.0
    %68 = vmatprep.subr.mxu0 0.0
    %69 = vmatpush1.msra.mxu0 0.0
    %70 = vmatprep.subr.mxu0 0.0
    %71 = vmatpush1.msra.mxu0 0.0
    %72 = vmatprep.subr.mxu0 0.0
    %73 = vmatpush1.msra.mxu0 0.0
    %74 = vmatprep.subr.mxu0 0.0
    %75 = vmatpush1.msra.mxu0 0.0
    %76 = vmatprep.subr.mxu0 0.0
    %77 = vmatpush1.msra.mxu0 0.0
    %78 = vmatprep.subr.mxu0 0.0
    %79 = vmatpush1.msra.mxu0 0.0
    %80 = vmatprep.subr.mxu0 0.0
    %81 = vmatpush1.msra.mxu0 0.0
    %82 = vmatprep.subr.mxu0 0.0
    %83 = vmatpush1.msra.mxu0 0.0
    %84 = vmatprep.subr.mxu0 0.0
    %85 = vmatpush1.msra.mxu0 0.0
    %86 = vmatprep.subr.mxu0 0.0
    %87 = vmatpush1.msra.mxu0 0.0
    %88 = vmatprep.subr.mxu0 0.0
    %89 = vmatpush1.msra.mxu0 0.0
    %90 = vmatprep.subr.mxu0 0.0
    %91 = vmatpush1.msra.mxu0 0.0
    %92 = vmatprep.subr.mxu0 0.0
    %93 = vmatpush1.msra.mxu0 0.0
    %94 = vmatprep.subr.mxu0 0.0
    %95 = vmatpush1.msra.mxu0 0.0
    %96 = vmatprep.subr.mxu0 0.0
    %97 = vmatpush1.msra.mxu0 0.0
    %98 = vmatprep.subr.mxu0 0.0
    %99 = vmatpush1.msra.mxu0 0.0
    %100 = vmatprep.subr.mxu0 0.0
    %101 = vmatpush1.msra.mxu0 0.0
    %102 = vmatprep.subr.mxu0 0.0
    %103 = vmatpush1.msra.mxu0 0.0
    %104 = vmatprep.subr.mxu0 0.0
    %105 = vmatpush1.msra.mxu0 0.0
    %106 = vmatprep.subr.mxu0 0.0
    %107 = vmatpush1.msra.mxu0 0.0
    %108 = vmatprep.subr.mxu0 0.0
    %109 = vmatpush1.msra.mxu0 0.0
    %110 = vmatprep.subr.mxu0 0.0
    %111 = vmatpush1.msra.mxu0 0.0
    %112 = vmatprep.subr.mxu0 0.0
    %113 = vmatpush1.msra.mxu0 0.0
    %114 = vmatprep.subr.mxu0 0.0
    %115 = vmatpush1.msra.mxu0 0.0
    %116 = vmatprep.subr.mxu0 0.0
    %117 = vmatpush1.msra.mxu0 0.0
    %118 = vmatprep.subr.mxu0 0.0
    %119 = vmatpush1.msra.mxu0 0.0
    %120 = vmatprep.mubr.f32.mxu0 0.0
    %121 = vmatmul.mubr.f32.gmra.mrb[0].mxu0 %v54
    %v122 = vpop.f32.mrb[0].mxu0
    %v123 = vadd.f32 0.0, %v122
    %v124 = vpop.f32.mrb[0].mxu0
    %125 = vdwg.mxu0
    %v126 = vadd.f32 %v50, %v123
    %127 = vst [vmem:[#allocation2] sm:$0xff] %v126
    // Predicated region
    $region26: #{tpu_custom_call.1} parent=1 // pred_check
      %p128 = pneg %p41
    $region27: #{tpu_custom_call.1} parent=1 // pred_check_branch
      %130 = sbr.rel (%p128) target = $region29
    $region28: #{tpu_custom_call.1} parent=1 // pred_region
      %v131 = vld [vmem:[#allocation2] sm:$0xff]
      %v132 = vld [vmem:[%s2] sm:$0x1]
      %v134 = vlaneseq
      %v135 = vshrl.u32 %v134, 7
      %v136 = vsub.s32 0, %v135
      %v137 = vrot.slane %v132, %v136
      %v139 = vadd.f32 %v131, %v137
      %140 = vst [vmem:[#allocation8] sm:$0xff] %v139
    $region29: #{tpu_custom_call.1} parent=1 // pred_fallthru
      _
    // Predicated region
    $region30: #{tpu_custom_call.1} parent=1 // pred_check
      _
    $region31: #{tpu_custom_call.1} parent=1 // pred_check_branch
      %142 = sbr.rel (0) target = $region33
    $region32: #{tpu_custom_call.1} parent=1 // pred_region
      %s144 = ssub.s32 128, 128
      %145 = vsyncadd [#allocation5], %s144
      %s147 = sshll.u32 [#allocation8], 4
      %s148 = int_to_ptr.vmem [resolvable:$true] %s147
      %150 = dma.vmem_to_hbm [thread:$0]  %s148, 128, %s3, [#allocation5]
    $region33: #{tpu_custom_call.1} parent=1 // pred_fallthru
      _
    // Predicated region
    $region34: #{tpu_custom_call.1} parent=1 // pred_check
      _
    $region35: #{tpu_custom_call.1} parent=1 // pred_check_branch
      %152 = sbr.rel (0) target = $region37
    $region36: #{tpu_custom_call.1} parent=1 // pred_region
      %153 = dma.done [#allocation5], 128
    $region37: #{tpu_custom_call.1} parent=1 // pred_fallthru
      _
    %154 = vsyncpa [#allocation4], 1
    %155 = vsyncpa [#allocation7], 1
    %156 = vsyncpa [#allocation5], 1

</llo_original>
